<compile_context>
chip_gen: v7x
topology: tpu7x:2x2x1
jax: 0.10.0
libtpu: 0.0.40
codegen_flags: <defaults>
</compile_context>

<pallas_src>
import functools

import jax
import jax.numpy as jnp
from jax.experimental import pallas as pl
from jax.experimental.pallas import tpu as pltpu


def _csar_kernel(x_ref, w1_ref, b1_ref, w2_ref, b2_ref, o_ref):
    # x_ref:  (1, C, T)   pixels on the lane axis, channels on sublanes
    # w1_ref: (GC, C)     conv1 weight (out, in)
    # b1_ref: (GC, 1)
    # w2_ref: (C, GC)     conv3 weight (out, in)
    # b2_ref: (C, 1)
    # o_ref:  (1, C, T)
    c_in = x_ref.shape[1]
    gc = w1_ref.shape[0]

    x = x_ref[0].astype(jnp.float32)          # (C, T)
    w1 = w1_ref[...].astype(jnp.float32)      # (GC, C)
    w2 = w2_ref[...].astype(jnp.float32)      # (C, GC)

    # spatial_layer1: 1x1 conv == per-pixel channel mix.  Unrolled VPU FMAs:
    #   h[g, :] = sum_c w1[g, c] * x[c, :] + b1[g]
    h = b1_ref[...].astype(jnp.float32)       # (GC, 1) -> lane-broadcast
    for c in range(c_in):
        h = h + w1[:, c:c + 1] * x[c:c + 1, :]
    # spatial_layer2: ReLU
    h = jnp.maximum(h, 0.0)                   # (GC, T)

    # spatial_layer3: 1x1 conv back to C channels.
    #   y[c, :] = sum_g w2[c, g] * h[g, :] + b2[c]
    y = b2_ref[...].astype(jnp.float32)       # (C, 1) -> lane-broadcast
    for g in range(gc):
        y = y + w2[:, g:g + 1] * h[g:g + 1, :]

    # sigmoid gate * input
    o_ref[0] = (x * jax.nn.sigmoid(y)).astype(o_ref.dtype)


@functools.partial(jax.jit, static_argnames=("tile_hw",))
def csar_spatial_gate(x_nchw, w1, b1, w2, b2, *, tile_hw=4096):
    """CSAR_SpatialGate forward.

    x_nchw: (N, C, H, W)
    w1: (GC, C)  conv1 weight (out, in) -- nn.Conv2d weight squeezed
    b1: (GC,)
    w2: (C, GC)  conv3 weight (out, in)
    b2: (C,)
    """
    n, c, h, w = x_nchw.shape
    gc = w1.shape[0]
    hw = h * w

    # Pure reshape (no transpose, no extra HBM pass): pixels -> lane axis.
    x3 = x_nchw.reshape(n, c, hw)

    # Lane tile: the full spatial extent if small, otherwise a large multiple
    # of 128 (partial last block handled by Pallas masking -- no jnp.pad).
    if hw <= tile_hw:
        t = hw
    else:
        t = (tile_hw // 128) * 128
    grid = (n, pl.cdiv(hw, t))

    b1_2d = b1.reshape(gc, 1)
    b2_2d = b2.reshape(c, 1)

    out3 = pl.pallas_call(
        _csar_kernel,
        out_shape=jax.ShapeDtypeStruct((n, c, hw), x_nchw.dtype),
        grid_spec=pltpu.PrefetchScalarGridSpec(
            num_scalar_prefetch=0,
            grid=grid,
            in_specs=[
                pl.BlockSpec((1, c, t), lambda i, j: (i, 0, j)),   # x tile
                pl.BlockSpec((gc, c), lambda i, j: (0, 0)),        # W1 (const)
                pl.BlockSpec((gc, 1), lambda i, j: (0, 0)),        # b1 (const)
                pl.BlockSpec((c, gc), lambda i, j: (0, 0)),        # W2 (const)
                pl.BlockSpec((c, 1), lambda i, j: (0, 0)),         # b2 (const)
            ],
            out_specs=pl.BlockSpec((1, c, t), lambda i, j: (i, 0, j)),
        ),
        compiler_params=pltpu.CompilerParams(
            dimension_semantics=("parallel", "parallel")),
    )(x3, w1, b1_2d, w2, b2_2d)

    return out3.reshape(n, c, h, w)


def _reference(x_nchw, w1, b1, w2, b2):
    # Pure-JAX reference of the PyTorch forward (conv-style weights).
    h = jnp.einsum("oc,nchw->nohw", w1, x_nchw) + b1[None, :, None, None]
    h = jnp.maximum(h, 0.0)
    y = jnp.einsum("co,nohw->nchw", w2, h) + b2[None, :, None, None]
    return x_nchw * jax.nn.sigmoid(y)


if __name__ == "__main__":
    n_feats, gama = 4, 2
    N, C, H, W = 2, n_feats, 16, 16
    GC = gama * n_feats

    key = jax.random.PRNGKey(0)
    kx, k1, k2, k3, k4, kx2 = jax.random.split(key, 6)

    x = jax.random.normal(kx, (N, C, H, W), dtype=jnp.float32)

    # Conv2d-1x1-style parameters: weight (out, in), bias (out,)
    bound1 = 1.0 / (C ** 0.5)
    w1 = jax.random.uniform(k1, (GC, C), minval=-bound1, maxval=bound1, dtype=jnp.float32)
    b1 = jax.random.uniform(k2, (GC,), minval=-bound1, maxval=bound1, dtype=jnp.float32)
    bound2 = 1.0 / (GC ** 0.5)
    w2 = jax.random.uniform(k3, (C, GC), minval=-bound2, maxval=bound2, dtype=jnp.float32)
    b2 = jax.random.uniform(k4, (C,), minval=-bound2, maxval=bound2, dtype=jnp.float32)

    out = jax.block_until_ready(csar_spatial_gate(x, w1, b1, w2, b2))
    ref = _reference(x, w1, b1, w2, b2)
    assert out.shape == (N, C, H, W)
    assert jnp.allclose(out, ref, atol=1e-5, rtol=1e-5), "mismatch vs reference"

    # Exercise the multi-tile path with a partial last lane-block (no padding).
    x2 = jax.random.normal(kx2, (N, C, 20, 20), dtype=jnp.float32)
    out2 = jax.block_until_ready(csar_spatial_gate(x2, w1, b1, w2, b2, tile_hw=256))
    ref2 = _reference(x2, w1, b1, w2, b2)
    assert jnp.allclose(out2, ref2, atol=1e-5, rtol=1e-5), "mismatch vs reference (partial block)"

    print("KERNEL_OK")
</pallas_src>

<mosaic_0001>
module attributes {stable_mosaic.version = 11 : i64} {
  func.func @_csar_kernel(%arg0: i32, %arg1: i32, %arg2: memref<1x4x256xf32, #tpu.memory_space<vmem>>, %arg3: memref<8x4xf32, #tpu.memory_space<vmem>>, %arg4: memref<8x1xf32, #tpu.memory_space<vmem>>, %arg5: memref<4x8xf32, #tpu.memory_space<vmem>>, %arg6: memref<4x1xf32, #tpu.memory_space<vmem>>, %arg7: memref<1x4x256xf32, #tpu.memory_space<vmem>>) attributes {dimension_semantics = [#tpu.dimension_semantics<parallel>, #tpu.dimension_semantics<parallel>], iteration_bounds = array<i64: 2, 1>, scalar_prefetch = 0 : i64, scratch_operands = 0 : i64, tpu.core_type = #tpu.core_type<tc>, window_params = [{transform_indices = @transform_0, window_bounds = array<i64: 1, 4, 256>}, {pipeline_mode = #tpu.pipeline_mode<synchronous>, transform_indices = @transform_1, window_bounds = array<i64: 8, 4>}, {pipeline_mode = #tpu.pipeline_mode<synchronous>, transform_indices = @transform_2, window_bounds = array<i64: 8, 1>}, {pipeline_mode = #tpu.pipeline_mode<synchronous>, transform_indices = @transform_3, window_bounds = array<i64: 4, 8>}, {pipeline_mode = #tpu.pipeline_mode<synchronous>, transform_indices = @transform_4, window_bounds = array<i64: 4, 1>}, {transform_indices = @transform_5, window_bounds = array<i64: 1, 4, 256>}]} {
    %c0 = arith.constant 0 : index
    %c0_0 = arith.constant 0 : index
    %c0_1 = arith.constant 0 : index
    %0 = vector.load %arg2[%c0, %c0_0, %c0_1] : memref<1x4x256xf32, #tpu.memory_space<vmem>>, vector<1x4x256xf32>
    %1 = vector.shape_cast %0 : vector<1x4x256xf32> to vector<4x256xf32>
    %c0_2 = arith.constant 0 : index
    %c0_3 = arith.constant 0 : index
    %2 = vector.load %arg3[%c0_2, %c0_3] : memref<8x4xf32, #tpu.memory_space<vmem>>, vector<8x4xf32>
    %c0_4 = arith.constant 0 : index
    %c0_5 = arith.constant 0 : index
    %3 = vector.load %arg5[%c0_4, %c0_5] : memref<4x8xf32, #tpu.memory_space<vmem>>, vector<4x8xf32>
    %c0_6 = arith.constant 0 : index
    %c0_7 = arith.constant 0 : index
    %4 = vector.load %arg4[%c0_6, %c0_7] : memref<8x1xf32, #tpu.memory_space<vmem>>, vector<8x1xf32>
    %5 = vector.extract_strided_slice %2 {offsets = [0, 0], sizes = [8, 1], strides = [1, 1]} : vector<8x4xf32> to vector<8x1xf32>
    %6 = vector.extract_strided_slice %1 {offsets = [0, 0], sizes = [1, 256], strides = [1, 1]} : vector<4x256xf32> to vector<1x256xf32>
    %7 = vector.broadcast %5 : vector<8x1xf32> to vector<8x256xf32>
    %8 = vector.broadcast %6 : vector<1x256xf32> to vector<8x256xf32>
    %9 = arith.mulf %7, %8 : vector<8x256xf32>
    %10 = vector.broadcast %4 : vector<8x1xf32> to vector<8x256xf32>
    %11 = arith.addf %10, %9 : vector<8x256xf32>
    %12 = vector.extract_strided_slice %2 {offsets = [0, 1], sizes = [8, 1], strides = [1, 1]} : vector<8x4xf32> to vector<8x1xf32>
    %13 = vector.extract_strided_slice %1 {offsets = [1, 0], sizes = [1, 256], strides = [1, 1]} : vector<4x256xf32> to vector<1x256xf32>
    %14 = vector.broadcast %12 : vector<8x1xf32> to vector<8x256xf32>
    %15 = vector.broadcast %13 : vector<1x256xf32> to vector<8x256xf32>
    %16 = arith.mulf %14, %15 : vector<8x256xf32>
    %17 = arith.addf %11, %16 : vector<8x256xf32>
    %18 = vector.extract_strided_slice %2 {offsets = [0, 2], sizes = [8, 1], strides = [1, 1]} : vector<8x4xf32> to vector<8x1xf32>
    %19 = vector.extract_strided_slice %1 {offsets = [2, 0], sizes = [1, 256], strides = [1, 1]} : vector<4x256xf32> to vector<1x256xf32>
    %20 = vector.broadcast %18 : vector<8x1xf32> to vector<8x256xf32>
    %21 = vector.broadcast %19 : vector<1x256xf32> to vector<8x256xf32>
    %22 = arith.mulf %20, %21 : vector<8x256xf32>
    %23 = arith.addf %17, %22 : vector<8x256xf32>
    %24 = vector.extract_strided_slice %2 {offsets = [0, 3], sizes = [8, 1], strides = [1, 1]} : vector<8x4xf32> to vector<8x1xf32>
    %25 = vector.extract_strided_slice %1 {offsets = [3, 0], sizes = [1, 256], strides = [1, 1]} : vector<4x256xf32> to vector<1x256xf32>
    %26 = vector.broadcast %24 : vector<8x1xf32> to vector<8x256xf32>
    %27 = vector.broadcast %25 : vector<1x256xf32> to vector<8x256xf32>
    %28 = arith.mulf %26, %27 : vector<8x256xf32>
    %29 = arith.addf %23, %28 : vector<8x256xf32>
    %cst = arith.constant 0.000000e+00 : f32
    %30 = vector.broadcast %cst : f32 to vector<8x256xf32>
    %31 = arith.maximumf %29, %30 : vector<8x256xf32>
    %c0_8 = arith.constant 0 : index
    %c0_9 = arith.constant 0 : index
    %32 = vector.load %arg6[%c0_8, %c0_9] : memref<4x1xf32, #tpu.memory_space<vmem>>, vector<4x1xf32>
    %33 = vector.extract_strided_slice %3 {offsets = [0, 0], sizes = [4, 1], strides = [1, 1]} : vector<4x8xf32> to vector<4x1xf32>
    %34 = vector.extract_strided_slice %31 {offsets = [0, 0], sizes = [1, 256], strides = [1, 1]} : vector<8x256xf32> to vector<1x256xf32>
    %35 = vector.broadcast %33 : vector<4x1xf32> to vector<4x256xf32>
    %36 = vector.broadcast %34 : vector<1x256xf32> to vector<4x256xf32>
    %37 = arith.mulf %35, %36 : vector<4x256xf32>
    %38 = vector.broadcast %32 : vector<4x1xf32> to vector<4x256xf32>
    %39 = arith.addf %38, %37 : vector<4x256xf32>
    %40 = vector.extract_strided_slice %3 {offsets = [0, 1], sizes = [4, 1], strides = [1, 1]} : vector<4x8xf32> to vector<4x1xf32>
    %41 = vector.extract_strided_slice %31 {offsets = [1, 0], sizes = [1, 256], strides = [1, 1]} : vector<8x256xf32> to vector<1x256xf32>
    %42 = vector.broadcast %40 : vector<4x1xf32> to vector<4x256xf32>
    %43 = vector.broadcast %41 : vector<1x256xf32> to vector<4x256xf32>
    %44 = arith.mulf %42, %43 : vector<4x256xf32>
    %45 = arith.addf %39, %44 : vector<4x256xf32>
    %46 = vector.extract_strided_slice %3 {offsets = [0, 2], sizes = [4, 1], strides = [1, 1]} : vector<4x8xf32> to vector<4x1xf32>
    %47 = vector.extract_strided_slice %31 {offsets = [2, 0], sizes = [1, 256], strides = [1, 1]} : vector<8x256xf32> to vector<1x256xf32>
    %48 = vector.broadcast %46 : vector<4x1xf32> to vector<4x256xf32>
    %49 = vector.broadcast %47 : vector<1x256xf32> to vector<4x256xf32>
    %50 = arith.mulf %48, %49 : vector<4x256xf32>
    %51 = arith.addf %45, %50 : vector<4x256xf32>
    %52 = vector.extract_strided_slice %3 {offsets = [0, 3], sizes = [4, 1], strides = [1, 1]} : vector<4x8xf32> to vector<4x1xf32>
    %53 = vector.extract_strided_slice %31 {offsets = [3, 0], sizes = [1, 256], strides = [1, 1]} : vector<8x256xf32> to vector<1x256xf32>
    %54 = vector.broadcast %52 : vector<4x1xf32> to vector<4x256xf32>
    %55 = vector.broadcast %53 : vector<1x256xf32> to vector<4x256xf32>
    %56 = arith.mulf %54, %55 : vector<4x256xf32>
    %57 = arith.addf %51, %56 : vector<4x256xf32>
    %58 = vector.extract_strided_slice %3 {offsets = [0, 4], sizes = [4, 1], strides = [1, 1]} : vector<4x8xf32> to vector<4x1xf32>
    %59 = vector.extract_strided_slice %31 {offsets = [4, 0], sizes = [1, 256], strides = [1, 1]} : vector<8x256xf32> to vector<1x256xf32>
    %60 = vector.broadcast %58 : vector<4x1xf32> to vector<4x256xf32>
    %61 = vector.broadcast %59 : vector<1x256xf32> to vector<4x256xf32>
    %62 = arith.mulf %60, %61 : vector<4x256xf32>
    %63 = arith.addf %57, %62 : vector<4x256xf32>
    %64 = vector.extract_strided_slice %3 {offsets = [0, 5], sizes = [4, 1], strides = [1, 1]} : vector<4x8xf32> to vector<4x1xf32>
    %65 = vector.extract_strided_slice %31 {offsets = [5, 0], sizes = [1, 256], strides = [1, 1]} : vector<8x256xf32> to vector<1x256xf32>
    %66 = vector.broadcast %64 : vector<4x1xf32> to vector<4x256xf32>
    %67 = vector.broadcast %65 : vector<1x256xf32> to vector<4x256xf32>
    %68 = arith.mulf %66, %67 : vector<4x256xf32>
    %69 = arith.addf %63, %68 : vector<4x256xf32>
    %70 = vector.extract_strided_slice %3 {offsets = [0, 6], sizes = [4, 1], strides = [1, 1]} : vector<4x8xf32> to vector<4x1xf32>
    %71 = vector.extract_strided_slice %31 {offsets = [6, 0], sizes = [1, 256], strides = [1, 1]} : vector<8x256xf32> to vector<1x256xf32>
    %72 = vector.broadcast %70 : vector<4x1xf32> to vector<4x256xf32>
    %73 = vector.broadcast %71 : vector<1x256xf32> to vector<4x256xf32>
    %74 = arith.mulf %72, %73 : vector<4x256xf32>
    %75 = arith.addf %69, %74 : vector<4x256xf32>
    %76 = vector.extract_strided_slice %3 {offsets = [0, 7], sizes = [4, 1], strides = [1, 1]} : vector<4x8xf32> to vector<4x1xf32>
    %77 = vector.extract_strided_slice %31 {offsets = [7, 0], sizes = [1, 256], strides = [1, 1]} : vector<8x256xf32> to vector<1x256xf32>
    %78 = vector.broadcast %76 : vector<4x1xf32> to vector<4x256xf32>
    %79 = vector.broadcast %77 : vector<1x256xf32> to vector<4x256xf32>
    %80 = arith.mulf %78, %79 : vector<4x256xf32>
    %81 = arith.addf %75, %80 : vector<4x256xf32>
    %82 = arith.negf %81 : vector<4x256xf32>
    %83 = math.exp %82 : vector<4x256xf32>
    %cst_10 = arith.constant 1.000000e+00 : f32
    %84 = vector.broadcast %cst_10 : f32 to vector<4x256xf32>
    %85 = arith.addf %84, %83 : vector<4x256xf32>
    %86 = arith.divf %84, %85 : vector<4x256xf32>
    %87 = arith.mulf %1, %86 : vector<4x256xf32>
    %c0_11 = arith.constant 0 : index
    %c0_12 = arith.constant 0 : index
    %c0_13 = arith.constant 0 : index
    %88 = vector.load %arg7[%c0_11, %c0_12, %c0_13] : memref<1x4x256xf32, #tpu.memory_space<vmem>>, vector<1x4x256xf32>
    %89 = vector.shape_cast %88 : vector<1x4x256xf32> to vector<4x256xf32>
    %90 = vector.shape_cast %87 : vector<4x256xf32> to vector<1x4x256xf32>
    tpu.vector_store %arg7[%c0_11, %c0_12, %c0_13], %90 {strides = array<i32>} : memref<1x4x256xf32, #tpu.memory_space<vmem>>, vector<1x4x256xf32>,
    return
  }
  func.func @transform_0(%arg0: i32, %arg1: i32) -> (i32, i32, i32) {
    %c0_i32 = arith.constant 0 : i32
    %c0_i32_0 = arith.constant 0 : i32
    return %arg0, %c0_i32, %arg1 : i32, i32, i32
  }
  func.func @transform_1(%arg0: i32, %arg1: i32) -> (i32, i32) {
    %c0_i32 = arith.constant 0 : i32
    %c0_i32_0 = arith.constant 0 : i32
    %c0_i32_1 = arith.constant 0 : i32
    return %c0_i32, %c0_i32_0 : i32, i32
  }
  func.func @transform_2(%arg0: i32, %arg1: i32) -> (i32, i32) {
    %c0_i32 = arith.constant 0 : i32
    %c0_i32_0 = arith.constant 0 : i32
    %c0_i32_1 = arith.constant 0 : i32
    return %c0_i32, %c0_i32_0 : i32, i32
  }
  func.func @transform_3(%arg0: i32, %arg1: i32) -> (i32, i32) {
    %c0_i32 = arith.constant 0 : i32
    %c0_i32_0 = arith.constant 0 : i32
    %c0_i32_1 = arith.constant 0 : i32
    return %c0_i32, %c0_i32_0 : i32, i32
  }
  func.func @transform_4(%arg0: i32, %arg1: i32) -> (i32, i32) {
    %c0_i32 = arith.constant 0 : i32
    %c0_i32_0 = arith.constant 0 : i32
    %c0_i32_1 = arith.constant 0 : i32
    return %c0_i32, %c0_i32_0 : i32, i32
  }
  func.func @transform_5(%arg0: i32, %arg1: i32) -> (i32, i32, i32) {
    %c0_i32 = arith.constant 0 : i32
    %c0_i32_0 = arith.constant 0 : i32
    return %arg0, %c0_i32, %arg1 : i32, i32, i32
  }
}

</mosaic_0001>

<llo_original>
// kernel: csar_spatial_gate.1
$region0: #{csar_spatial_gate.1}
  #allocation0 [shape = 'u32[]', space=smem, size = 0x4, offset = 0x4, fixed_abs, tag = 'smem constant byte address 0x4 - core index']
  #allocation1 [shape = 'u32[144,128]{1,0:T(1,128)}', space=vmem, size = 0x12000, scoped, tag = 'internal scratch']
  %s0 = inlined_call_operand.vmem [shape: f32[2,4,256], index: 0, kind: input, shape index: {}]
  %s1 = inlined_call_operand.vmem [shape: f32[8,4], index: 1, kind: input, shape index: {}]
  %s2 = inlined_call_operand.vmem [shape: f32[8,1], index: 2, kind: input, shape index: {}]
  %s3 = inlined_call_operand.vmem [shape: f32[4,8], index: 3, kind: input, shape index: {}]
  %s4 = inlined_call_operand.vmem [shape: f32[4,1], index: 4, kind: input, shape index: {}]
  %s5 = inlined_call_operand.vmem [shape: f32[2,4,256], index: 5, kind: output, shape index: {}]
  %s6 = sld [smem:[#allocation0]]
  $region53: #{csar_spatial_gate.1} parent=0
    _
  %s8 = ssub.s32 1, %s6
  %s9 = scalar_select 0, %s8, %s6
  loop: start=0, step=1, limit=4
  $region2: #{csar_spatial_gate.1} parent=0 // loop_pre_header
    _
  $region3: #{csar_spatial_gate.1} parent=0 // loop_header
    %s11 = sphi 0, %s15
    %p12 = scmp.ge.s32.totalorder %s11, 4
    %s18 = sphi 0, %s30
    %s19 = sphi 0, %s26
    %s20 = sphi 0, %s18
    %s21 = sphi 0, %s19
    %s22 = sphi 0, %s20
    %s23 = sphi 0, %s21
    %s35 = sphi 0, %s37
    %s38 = sphi 0, %s35
    %s39 = sphi 0, %s38
    %s55 = sphi 0, %s39
    %s59 = sphi 0, %s59
    %s61 = sphi 0, %s59
    %s62 = sphi 0, %s61
    %s76 = sphi 0, %s62
    %s80 = sphi 0, %s80
    %s82 = sphi 0, %s80
    %s83 = sphi 0, %s82
    %s97 = sphi 0, %s83
    %s101 = sphi 0, %s101
    %s103 = sphi 0, %s101
    %s104 = sphi 0, %s103
    %s118 = sphi 0, %s104
    %s122 = sphi 0, %s122
    %s124 = sphi 0, %s122
    %s125 = sphi 0, %s124
    %s139 = sphi 0, %s125
    %s147 = sphi 0, %s149
    %s150 = sphi 0, %s147
    %s151 = sphi 0, %s150
    %s167 = sphi 0, %s151
  $region4: #{csar_spatial_gate.1} parent=0 // loop_header_branch
    %14 = sbr.rel (%p12) target = $region8
  $region5: #{csar_spatial_gate.1} parent=0 // loop_body
    %s16 = ssub.s32 %s11, 1
    %s17 = ssub.s32 %s11, 2
    %s24 = sadd.s32 1, %s19
    %p25 = scmp.ge.s32.totalorder %s24, 1
    %s26 = scalar_select %p25, 0, %s24
    %s27 = sadd.s32 1, %s18
    %s28 = scalar_select %p25, %s27, %s18
    %p29 = scmp.ge.s32.totalorder %s28, 2
    %s30 = scalar_select %p29, 0, %s28
    %s31 = ssub.s32 %s18, %s30
    %s32 = ssub.s32 %s19, %s26
    %s33 = sor.u32 %s31, %s32
    %p34 = scmp.eq.s32.totalorder %s33, 0
    %s36 = sadd.s32 %s35, 1
    %s37 = scalar_select %p34, %s35, %s36
    %p40 = pneg %p34
    %p41 = scmp.eq.s32.totalorder %s11, 1
    %p42 = por %p40, %p41
    %p43 = scmp.ne.s32.totalorder %s35, %s38
    %p44 = scmp.eq.s32.totalorder %s11, 0
    %p45 = por %p43, %p44
    %p46 = scmp.ne.s32.totalorder %s35, %s38
    %p47 = scmp.eq.s32.totalorder %s16, 1
    %p48 = por %p46, %p47
    %p49 = scmp.ne.s32.totalorder %s38, %s39
    %p50 = scmp.eq.s32.totalorder %s16, 0
    %p51 = por %p49, %p50
    %p52 = scmp.ne.s32.totalorder %s38, %s39
    %p53 = scmp.eq.s32.totalorder %s17, 1
    %p54 = por %p52, %p53
    %p56 = scmp.ne.s32.totalorder %s39, %s55
    %p57 = scmp.eq.s32.totalorder %s17, 0
    %p58 = por %p56, %p57
    %s60 = sadd.s32 %s59, 1
    %p63 = scmp.eq.s32.totalorder %s11, 1
    %p64 = scmp.ne.s32.totalorder %s59, %s61
    %p65 = scmp.eq.s32.totalorder %s11, 0
    %p66 = por %p64, %p65
    %p67 = scmp.ne.s32.totalorder %s59, %s61
    %p68 = scmp.eq.s32.totalorder %s16, 1
    %p69 = por %p67, %p68
    %p70 = scmp.ne.s32.totalorder %s61, %s62
    %p71 = scmp.eq.s32.totalorder %s16, 0
    %p72 = por %p70, %p71
    %p73 = scmp.ne.s32.totalorder %s61, %s62
    %p74 = scmp.eq.s32.totalorder %s17, 1
    %p75 = por %p73, %p74
    %p77 = scmp.ne.s32.totalorder %s62, %s76
    %p78 = scmp.eq.s32.totalorder %s17, 0
    %p79 = por %p77, %p78
    %s81 = sadd.s32 %s80, 1
    %p84 = scmp.eq.s32.totalorder %s11, 1
    %p85 = scmp.ne.s32.totalorder %s80, %s82
    %p86 = scmp.eq.s32.totalorder %s11, 0
    %p87 = por %p85, %p86
    %p88 = scmp.ne.s32.totalorder %s80, %s82
    %p89 = scmp.eq.s32.totalorder %s16, 1
    %p90 = por %p88, %p89
    %p91 = scmp.ne.s32.totalorder %s82, %s83
    %p92 = scmp.eq.s32.totalorder %s16, 0
    %p93 = por %p91, %p92
    %p94 = scmp.ne.s32.totalorder %s82, %s83
    %p95 = scmp.eq.s32.totalorder %s17, 1
    %p96 = por %p94, %p95
    %p98 = scmp.ne.s32.totalorder %s83, %s97
    %p99 = scmp.eq.s32.totalorder %s17, 0
    %p100 = por %p98, %p99
    %s102 = sadd.s32 %s101, 1
    %p105 = scmp.eq.s32.totalorder %s11, 1
    %p106 = scmp.ne.s32.totalorder %s101, %s103
    %p107 = scmp.eq.s32.totalorder %s11, 0
    %p108 = por %p106, %p107
    %p109 = scmp.ne.s32.totalorder %s101, %s103
    %p110 = scmp.eq.s32.totalorder %s16, 1
    %p111 = por %p109, %p110
    %p112 = scmp.ne.s32.totalorder %s103, %s104
    %p113 = scmp.eq.s32.totalorder %s16, 0
    %p114 = por %p112, %p113
    %p115 = scmp.ne.s32.totalorder %s103, %s104
    %p116 = scmp.eq.s32.totalorder %s17, 1
    %p117 = por %p115, %p116
    %p119 = scmp.ne.s32.totalorder %s104, %s118
    %p120 = scmp.eq.s32.totalorder %s17, 0
    %p121 = por %p119, %p120
    %s123 = sadd.s32 %s122, 1
    %p126 = scmp.eq.s32.totalorder %s11, 1
    %p127 = scmp.ne.s32.totalorder %s122, %s124
    %p128 = scmp.eq.s32.totalorder %s11, 0
    %p129 = por %p127, %p128
    %p130 = scmp.ne.s32.totalorder %s122, %s124
    %p131 = scmp.eq.s32.totalorder %s16, 1
    %p132 = por %p130, %p131
    %p133 = scmp.ne.s32.totalorder %s124, %s125
    %p134 = scmp.eq.s32.totalorder %s16, 0
    %p135 = por %p133, %p134
    %p136 = scmp.ne.s32.totalorder %s124, %s125
    %p137 = scmp.eq.s32.totalorder %s17, 1
    %p138 = por %p136, %p137
    %p140 = scmp.ne.s32.totalorder %s125, %s139
    %p141 = scmp.eq.s32.totalorder %s17, 0
    %p142 = por %p140, %p141
    %s143 = ssub.s32 %s18, %s30
    %s144 = ssub.s32 %s19, %s26
    %s145 = sor.u32 %s143, %s144
    %p146 = scmp.eq.s32.totalorder %s145, 0
    %s148 = sadd.s32 %s147, 1
    %s149 = scalar_select %p146, %s147, %s148
    %p152 = pneg %p146
    %p153 = scmp.eq.s32.totalorder %s11, 1
    %p154 = por %p152, %p153
    %p155 = scmp.ne.s32.totalorder %s147, %s150
    %p156 = scmp.eq.s32.totalorder %s11, 0
    %p157 = por %p155, %p156
    %p158 = scmp.ne.s32.totalorder %s147, %s150
    %p159 = scmp.eq.s32.totalorder %s16, 1
    %p160 = por %p158, %p159
    %p161 = scmp.ne.s32.totalorder %s150, %s151
    %p162 = scmp.eq.s32.totalorder %s16, 0
    %p163 = por %p161, %p162
    %p164 = scmp.ne.s32.totalorder %s150, %s151
    %p165 = scmp.eq.s32.totalorder %s17, 1
    %p166 = por %p164, %p165
    %p168 = scmp.ne.s32.totalorder %s151, %s167
    %p169 = scmp.eq.s32.totalorder %s17, 0
    %p170 = por %p168, %p169
    %p171 = scmp.le.s32.totalorder 1, %s11
    %p172 = scmp.lt.s32.totalorder %s11, 3
    %p173 = pnand %p171, %p172
    %p174 = pneg %p173
    // Predicated region
    $region9: #{csar_spatial_gate.1} parent=5 // pred_check
      _
    $region10: #{csar_spatial_gate.1} parent=5 // pred_check_branch
      %176 = sbr.rel (%p173) target = $region12
    $region11: #{csar_spatial_gate.1} parent=5 // pred_region
      %s177 = ssub.s32 %s11, 1
      // Predicated region
      $region13: #{csar_spatial_gate.1} parent=11 // pred_check
        %p178 = pneg %p72
      $region14: #{csar_spatial_gate.1} parent=11 // pred_check_branch
        %180 = sbr.rel (%p178) target = $region16
      $region15: #{csar_spatial_gate.1} parent=11 // pred_region
        _
      $region16: #{csar_spatial_gate.1} parent=11 // pred_fallthru
        _
      // Predicated region
      $region17: #{csar_spatial_gate.1} parent=11 // pred_check
        %p181 = pneg %p93
      $region18: #{csar_spatial_gate.1} parent=11 // pred_check_branch
        %183 = sbr.rel (%p181) target = $region20
      $region19: #{csar_spatial_gate.1} parent=11 // pred_region
        _
      $region20: #{csar_spatial_gate.1} parent=11 // pred_fallthru
        _
      // Predicated region
      $region21: #{csar_spatial_gate.1} parent=11 // pred_check
        %p184 = pneg %p114
      $region22: #{csar_spatial_gate.1} parent=11 // pred_check_branch
        %186 = sbr.rel (%p184) target = $region24
      $region23: #{csar_spatial_gate.1} parent=11 // pred_region
        _
      $region24: #{csar_spatial_gate.1} parent=11 // pred_fallthru
        _
      // Predicated region
      $region25: #{csar_spatial_gate.1} parent=11 // pred_check
        %p187 = pneg %p135
      $region26: #{csar_spatial_gate.1} parent=11 // pred_check_branch
        %189 = sbr.rel (%p187) target = $region28
      $region27: #{csar_spatial_gate.1} parent=11 // pred_region
        _
      $region28: #{csar_spatial_gate.1} parent=11 // pred_fallthru
        _
    $region12: #{csar_spatial_gate.1} parent=5 // pred_fallthru
      _
    %p190 = scmp.lt.s32.totalorder %s11, 2
    // Predicated region
    $region29: #{csar_spatial_gate.1} parent=5 // pred_check
      %p191 = pneg %p190
    $region30: #{csar_spatial_gate.1} parent=5 // pred_check_branch
      %193 = sbr.rel (%p191) target = $region32
    $region31: #{csar_spatial_gate.1} parent=5 // pred_region
      // Predicated region
      $region33: #{csar_spatial_gate.1} parent=31 // pred_check
        %p194 = pneg %p45
      $region34: #{csar_spatial_gate.1} parent=31 // pred_check_branch
        %196 = sbr.rel (%p194) target = $region36
      $region35: #{csar_spatial_gate.1} parent=31 // pred_region
        %s197 = smul.u32 2, %s19
        %p198 = scmp.lt.s32.totalorder %s18, 1
        %s199 = scalar_select %p198, %s18, 1
        %p200 = scmp.lt.s32.totalorder %s197, 1
        %s201 = scalar_select %p200, %s197, 1
        %s202 = smul.addr %s199, 2
        %s203 = sadd.s32 %s201, %s202
        %s204 = smul.addr %s203, 4
        %s205 = scalar_lea.vmem %s0, %s204
        %s206 = smul.u32 2, %s19
      $region36: #{csar_spatial_gate.1} parent=31 // pred_fallthru
        _
    $region32: #{csar_spatial_gate.1} parent=5 // pred_fallthru
      _
    %p207 = scmp.le.s32.totalorder 1, %s11
    %p208 = scmp.lt.s32.totalorder %s11, 3
    %p209 = pnand %p207, %p208
    %p210 = pneg %p209
    // Predicated region
    $region37: #{csar_spatial_gate.1} parent=5 // pred_check
      _
    $region38: #{csar_spatial_gate.1} parent=5 // pred_check_branch
      %212 = sbr.rel (%p209) target = $region40
    $region39: #{csar_spatial_gate.1} parent=5 // pred_region
      %s213 = ssub.s32 %s11, 1
      %s214 = smul.u32 2, %s21
      %p215 = scmp.lt.s32.totalorder %s20, 1
      %s216 = scalar_select %p215, %s20, 1
      %p217 = scmp.lt.s32.totalorder %s214, 1
      %s218 = scalar_select %p217, %s214, 1
      %s219 = smul.addr %s216, 2
      %s220 = sadd.s32 %s218, %s219
      %s221 = smul.addr %s220, 4
      %s222 = scalar_lea.vmem %s0, %s221
      %p223 = pneg %p51
      %p224 = pneg %p48
      %p225 = pneg %p72
      %p226 = pneg %p69
      %p227 = pneg %p93
      %p228 = pneg %p90
      %p229 = pneg %p114
      %p230 = pneg %p111
      %p231 = pneg %p135
      %p232 = pneg %p132
      %p233 = pneg %p163
      %p234 = pneg %p160
      %s235 = smul.u32 2, %s21
      %p236 = scmp.lt.s32.totalorder %s20, 1
      %s237 = scalar_select %p236, %s20, 1
      %p238 = scmp.lt.s32.totalorder %s235, 1
      %s239 = scalar_select %p238, %s235, 1
      %s240 = smul.addr %s237, 2
      %s241 = sadd.s32 %s239, %s240
      %s242 = smul.addr %s241, 4
      %s243 = scalar_lea.vmem %s5, %s242
      %s244 = smul.u32 2, %s21
      %p245 = scmp.lt.s32.totalorder %s20, 1
      %s246 = scalar_select %p245, %s20, 1
      %p247 = scmp.lt.s32.totalorder %s244, 1
      %s248 = scalar_select %p247, %s244, 1
      %s249 = smul.addr %s246, 2
      %s250 = sadd.s32 %s248, %s249
      %s251 = smul.addr %s250, 4
      %s252 = scalar_lea.vmem %s0, %s251
      %s253 = smul.u32 2, %s21
      %s254 = smul.u32 2, %s21
      %p255 = scmp.lt.s32.totalorder %s20, 1
      %s256 = scalar_select %p255, %s20, 1
      %p257 = scmp.lt.s32.totalorder %s254, 1
      %s258 = scalar_select %p257, %s254, 1
      %s259 = smul.addr %s256, 2
      %s260 = sadd.s32 %s258, %s259
      %s261 = smul.addr %s260, 4
      %s262 = scalar_lea.vmem %s5, %s261
      %s263 = smul.u32 2, %s21
      %v264 = vld [vmem:[%s252] sm:$0xff]
      %v265 = vld [vmem:[%s1] sm:$0xff]
      %v266 = vld [vmem:[%s3] sm:$0xf]
      %v267 = vld [vmem:[%s2] sm:$0xff]
      %269 = vset.pattern.permute.xlu0 0
      %270 = vperm.xlu0 %269, %v265
      %v271 = vpop.permute.xlu0 %270
      %v274 = vlaneseq
      %v275 = vshrl.u32 %v274, 7
      %v276 = vsub.s32 0, %v275
      %v277 = vrot.slane %v264, %v276
      %v278 = vlaneseq
      %v279 = vshrl.u32 %v278, 7
      %v280 = vsub.s32 4, %v279
      %v281 = vrot.slane %v264, %v280
      %v284 = vlaneseq
      %v285 = vshrl.u32 %v284, 7
      %v286 = vsub.s32 0, %v285
      %v287 = vrot.slane %v277, %v286
      %v288 = vlaneseq
      %v289 = vshrl.u32 %v288, 7
      %v290 = vsub.s32 0, %v289
      %v291 = vrot.slane %v281, %v290
      %v292 = vmul.f32 %v271, %v287
      %v293 = vmul.f32 %v271, %v291
      %295 = vset.pattern.permute.xlu0 0
      %296 = vperm.xlu0 %295, %v267
      %v297 = vpop.permute.xlu0 %296
      %v299 = vadd.f32 %v297, %v292
      %v300 = vadd.f32 %v297, %v293
      %301 = vset.pattern.permute.xlu0 1
      %302 = vperm.xlu0 %301, %v265
      %v303 = vpop.permute.xlu0 %302
      %v305 = vlaneseq
      %v306 = vshrl.u32 %v305, 7
      %v307 = vsub.s32 1, %v306
      %v308 = vrot.slane %v264, %v307
      %v309 = vlaneseq
      %v310 = vshrl.u32 %v309, 7
      %v311 = vsub.s32 5, %v310
      %v312 = vrot.slane %v264, %v311
      %v315 = vlaneseq
      %v316 = vshrl.u32 %v315, 7
      %v317 = vsub.s32 1, %v316
      %v318 = vrot.slane %v308, %v317
      %v319 = vlaneseq
      %v320 = vshrl.u32 %v319, 7
      %v321 = vsub.s32 1, %v320
      %v322 = vrot.slane %v312, %v321
      %v323 = vmul.f32 %v303, %v318
      %v324 = vmul.f32 %v303, %v322
      %v325 = vadd.f32 %v299, %v323
      %v326 = vadd.f32 %v300, %v324
      %327 = vset.pattern.permute.xlu0 2
      %328 = vperm.xlu0 %327, %v265
      %v329 = vpop.permute.xlu0 %328
      %v331 = vlaneseq
      %v332 = vshrl.u32 %v331, 7
      %v333 = vsub.s32 2, %v332
      %v334 = vrot.slane %v264, %v333
      %v335 = vlaneseq
      %v336 = vshrl.u32 %v335, 7
      %v337 = vsub.s32 6, %v336
      %v338 = vrot.slane %v264, %v337
      %v341 = vlaneseq
      %v342 = vshrl.u32 %v341, 7
      %v343 = vsub.s32 2, %v342
      %v344 = vrot.slane %v334, %v343
      %v345 = vlaneseq
      %v346 = vshrl.u32 %v345, 7
      %v347 = vsub.s32 2, %v346
      %v348 = vrot.slane %v338, %v347
      %v349 = vmul.f32 %v329, %v344
      %v350 = vmul.f32 %v329, %v348
      %v351 = vadd.f32 %v325, %v349
      %v352 = vadd.f32 %v326, %v350
      %353 = vset.pattern.permute.xlu0 3
      %354 = vperm.xlu0 %353, %v265
      %v355 = vpop.permute.xlu0 %354
      %v357 = vlaneseq
      %v358 = vshrl.u32 %v357, 7
      %v359 = vsub.s32 3, %v358
      %v360 = vrot.slane %v264, %v359
      %v361 = vlaneseq
      %v362 = vshrl.u32 %v361, 7
      %v363 = vsub.s32 7, %v362
      %v364 = vrot.slane %v264, %v363
      %v367 = vlaneseq
      %v368 = vshrl.u32 %v367, 7
      %v369 = vsub.s32 3, %v368
      %v370 = vrot.slane %v360, %v369
      %v371 = vlaneseq
      %v372 = vshrl.u32 %v371, 7
      %v373 = vsub.s32 3, %v372
      %v374 = vrot.slane %v364, %v373
      %v375 = vmul.f32 %v355, %v370
      %v376 = vmul.f32 %v355, %v374
      %v377 = vadd.f32 %v351, %v375
      %v378 = vadd.f32 %v352, %v376
      %v379 = vmax.f32 %v377, 0.0
      %v380 = vmax.f32 %v378, 0.0
      %v381 = vld [vmem:[%s4] sm:$0xf]
      %383 = vset.pattern.permute.xlu0 0
      %384 = vperm.xlu0 %383, %v266
      %v385 = vpop.permute.xlu0 %384
      %v387 = vlaneseq
      %v388 = vshrl.u32 %v387, 7
      %v389 = vsub.s32 0, %v388
      %v390 = vrot.slane %v379, %v389
      %v391 = vlaneseq
      %v392 = vshrl.u32 %v391, 7
      %v393 = vsub.s32 0, %v392
      %v394 = vrot.slane %v380, %v393
      %v395 = vmul.f32 %v385, %v390
      %v396 = vmul.f32 %v385, %v394
      %398 = vset.pattern.permute.xlu0 0
      %399 = vperm.xlu0 %398, %v381
      %v400 = vpop.permute.xlu0 %399
      %v402 = vadd.f32 %v400, %v395
      %v403 = vadd.f32 %v400, %v396
      %404 = vset.pattern.permute.xlu0 1
      %405 = vperm.xlu0 %404, %v266
      %v406 = vpop.permute.xlu0 %405
      %v408 = vlaneseq
      %v409 = vshrl.u32 %v408, 7
      %v410 = vsub.s32 1, %v409
      %v411 = vrot.slane %v379, %v410
      %v412 = vlaneseq
      %v413 = vshrl.u32 %v412, 7
      %v414 = vsub.s32 1, %v413
      %v415 = vrot.slane %v380, %v414
      %v416 = vmul.f32 %v406, %v411
      %v417 = vmul.f32 %v406, %v415
      %v418 = vadd.f32 %v402, %v416
      %v419 = vadd.f32 %v403, %v417
      %420 = vset.pattern.permute.xlu0 2
      %421 = vperm.xlu0 %420, %v266
      %v422 = vpop.permute.xlu0 %421
      %v424 = vlaneseq
      %v425 = vshrl.u32 %v424, 7
      %v426 = vsub.s32 2, %v425
      %v427 = vrot.slane %v379, %v426
      %v428 = vlaneseq
      %v429 = vshrl.u32 %v428, 7
      %v430 = vsub.s32 2, %v429
      %v431 = vrot.slane %v380, %v430
      %v432 = vmul.f32 %v422, %v427
      %v433 = vmul.f32 %v422, %v431
      %v434 = vadd.f32 %v418, %v432
      %v435 = vadd.f32 %v419, %v433
      %436 = vset.pattern.permute.xlu0 3
      %437 = vperm.xlu0 %436, %v266
      %v438 = vpop.permute.xlu0 %437
      %v440 = vlaneseq
      %v441 = vshrl.u32 %v440, 7
      %v442 = vsub.s32 3, %v441
      %v443 = vrot.slane %v379, %v442
      %v444 = vlaneseq
      %v445 = vshrl.u32 %v444, 7
      %v446 = vsub.s32 3, %v445
      %v447 = vrot.slane %v380, %v446
      %v448 = vmul.f32 %v438, %v443
      %v449 = vmul.f32 %v438, %v447
      %v450 = vadd.f32 %v434, %v448
      %v451 = vadd.f32 %v435, %v449
      %452 = vset.pattern.permute.xlu0 4
      %453 = vperm.xlu0 %452, %v266
      %v454 = vpop.permute.xlu0 %453
      %v456 = vlaneseq
      %v457 = vshrl.u32 %v456, 7
      %v458 = vsub.s32 4, %v457
      %v459 = vrot.slane %v379, %v458
      %v460 = vlaneseq
      %v461 = vshrl.u32 %v460, 7
      %v462 = vsub.s32 4, %v461
      %v463 = vrot.slane %v380, %v462
      %v464 = vmul.f32 %v454, %v459
      %v465 = vmul.f32 %v454, %v463
      %v466 = vadd.f32 %v450, %v464
      %v467 = vadd.f32 %v451, %v465
      %468 = vset.pattern.permute.xlu0 5
      %469 = vperm.xlu0 %468, %v266
      %v470 = vpop.permute.xlu0 %469
      %v472 = vlaneseq
      %v473 = vshrl.u32 %v472, 7
      %v474 = vsub.s32 5, %v473
      %v475 = vrot.slane %v379, %v474
      %v476 = vlaneseq
      %v477 = vshrl.u32 %v476, 7
      %v478 = vsub.s32 5, %v477
      %v479 = vrot.slane %v380, %v478
      %v480 = vmul.f32 %v470, %v475
      %v481 = vmul.f32 %v470, %v479
      %v482 = vadd.f32 %v466, %v480
      %v483 = vadd.f32 %v467, %v481
      %484 = vset.pattern.permute.xlu0 6
      %485 = vperm.xlu0 %484, %v266
      %v486 = vpop.permute.xlu0 %485
      %v488 = vlaneseq
      %v489 = vshrl.u32 %v488, 7
      %v490 = vsub.s32 6, %v489
      %v491 = vrot.slane %v379, %v490
      %v492 = vlaneseq
      %v493 = vshrl.u32 %v492, 7
      %v494 = vsub.s32 6, %v493
      %v495 = vrot.slane %v380, %v494
      %v496 = vmul.f32 %v486, %v491
      %v497 = vmul.f32 %v486, %v495
      %v498 = vadd.f32 %v482, %v496
      %v499 = vadd.f32 %v483, %v497
      %500 = vset.pattern.permute.xlu0 7
      %501 = vperm.xlu0 %500, %v266
      %v502 = vpop.permute.xlu0 %501
      %v504 = vlaneseq
      %v505 = vshrl.u32 %v504, 7
      %v506 = vsub.s32 7, %v505
      %v507 = vrot.slane %v379, %v506
      %v508 = vlaneseq
      %v509 = vshrl.u32 %v508, 7
      %v510 = vsub.s32 7, %v509
      %v511 = vrot.slane %v380, %v510
      %v512 = vmul.f32 %v502, %v507
      %v513 = vmul.f32 %v502, %v511
      %v514 = vadd.f32 %v498, %v512
      %v515 = vadd.f32 %v499, %v513
      %v516 = vxor.u32 %v514, 2147483648
      %v517 = vxor.u32 %v515, 2147483648
      %v518 = vmul.f32 %v516, 1.442695
      %v519 = vpow.pop %v518
      %v520 = vmul.f32 %v517, 1.442695
      %v521 = vpow.pop %v520
      %v522 = vadd.f32 %v519, 1.0
      %v523 = vadd.f32 %v521, 1.0
      %v524 = vrcp.pop %v522
      %v525 = vmul.f32 1.0, %v524
      %v526 = vrcp.pop %v523
      %v527 = vmul.f32 1.0, %v526
      %v530 = vcombine.low %v525, %v527
      %v532 = vmul.f32 %v264, %v530
      %533 = vst [vmem:[%s262] sm:$0xff] %v532
      %s534 = smul.u32 2, %s21
      %p535 = scmp.lt.s32.totalorder %s20, 1
      %s536 = scalar_select %p535, %s20, 1
      %p537 = scmp.lt.s32.totalorder %s534, 1
      %s538 = scalar_select %p537, %s534, 1
      %s539 = smul.addr %s536, 2
      %s540 = sadd.s32 %s538, %s539
      %s541 = smul.addr %s540, 4
      %s542 = scalar_lea.vmem %s5, %s541
      // Predicated region
      $region41: #{csar_spatial_gate.1} parent=39 // pred_check
        %p543 = pneg %p160
      $region42: #{csar_spatial_gate.1} parent=39 // pred_check_branch
        %545 = sbr.rel (%p543) target = $region44
      $region43: #{csar_spatial_gate.1} parent=39 // pred_region
        %s546 = smul.u32 2, %s21
      $region44: #{csar_spatial_gate.1} parent=39 // pred_fallthru
        _
    $region40: #{csar_spatial_gate.1} parent=5 // pred_fallthru
      _
    %p547 = scmp.le.s32.totalorder 2, %s11
    // Predicated region
    $region45: #{csar_spatial_gate.1} parent=5 // pred_check
      %p548 = pneg %p547
    $region46: #{csar_spatial_gate.1} parent=5 // pred_check_branch
      %550 = sbr.rel (%p548) target = $region48
    $region47: #{csar_spatial_gate.1} parent=5 // pred_region
      %s551 = ssub.s32 %s11, 2
      // Predicated region
      $region49: #{csar_spatial_gate.1} parent=47 // pred_check
        %p552 = pneg %p166
      $region50: #{csar_spatial_gate.1} parent=47 // pred_check_branch
        %554 = sbr.rel (%p552) target = $region52
      $region51: #{csar_spatial_gate.1} parent=47 // pred_region
        %s555 = smul.u32 2, %s23
        %p556 = scmp.lt.s32.totalorder %s22, 1
        %s557 = scalar_select %p556, %s22, 1
        %p558 = scmp.lt.s32.totalorder %s555, 1
        %s559 = scalar_select %p558, %s555, 1
        %s560 = smul.addr %s557, 2
        %s561 = sadd.s32 %s559, %s560
        %s562 = smul.addr %s561, 4
        %s563 = scalar_lea.vmem %s5, %s562
      $region52: #{csar_spatial_gate.1} parent=47 // pred_fallthru
        _
    $region48: #{csar_spatial_gate.1} parent=5 // pred_fallthru
      _
  $region6: #{csar_spatial_gate.1} parent=0 // loop_footer
    %s15 = sadd.s32 1, %s11
  $region7: #{csar_spatial_gate.1} parent=0 // loop_footer_branch
    %10 = sbr.rel target = $region3
  $region8: #{csar_spatial_gate.1} parent=0 // loop_exit
    _

</llo_original>
